<compile_context>
chip_gen: v7x
topology: tpu7x:2x2x1
jax: 0.10.0
libtpu: 0.0.40
codegen_flags: <defaults>
</compile_context>

<pallas_src>
import jax
import jax.numpy as jnp
from jax.experimental import pallas as pl
from jax.experimental.pallas import tpu as pltpu

PRECISION_BITS = 23
SCALE = float(2 ** PRECISION_BITS)          # scale_factor = 2**precision_bits
INV_SCALE = 1.0 / SCALE


def homomorphic_linear_kernel(x_ref, w_ref, b_ref, o_ref, acc_ref):
    k = pl.program_id(2)

    # --- init accumulator on the first K step -------------------------------
    @pl.when(k == 0)
    def _():
        acc_ref[...] = jnp.zeros_like(acc_ref)

    # --- encode: trunc(x * 2**23) toward zero --------------------------------
    # Single VPU op; numerically identical to torch's (x*scale).long() cast for
    # values representable in the f32 product (and avoids int32 wraparound).
    # TODO(synk): torch keeps the encoded tensor in int64; the TPU MXU has no
    # int64 path, so the integer-valued encoding is carried in f32 (exact-int
    # fidelity bounded by the 24-bit f32 mantissa; secure_mode's exact modular
    # arithmetic would not be representable this way).
    enc = jnp.trunc(x_ref[...] * SCALE)

    # --- wrapped module: Linear, accumulated over K tiles on the MXU ---------
    acc_ref[...] += jnp.dot(enc, w_ref[...], preferred_element_type=jnp.float32)

    # --- decode + bias on the last K step ------------------------------------
    @pl.when(k == pl.num_programs(2) - 1)
    def _():
        o_ref[...] = (acc_ref[...] + b_ref[...]) * INV_SCALE


def homomorphic_linear(x, w_t, b, *, tm=128, tn=128, tk=256):
    """Fused encode -> Linear -> decode.

    x:   [B, Din]   f32 activations
    w_t: [Din, Dout] f32 (torch weight [Dout, Din] transposed)
    b:   [1, Dout]  f32 bias
    Tiles: tm/tn multiples of 128 (256 preferred on v6e/v7x for large problems),
    tk >= 256 when Din allows.
    """
    B, Din = x.shape
    Dout = w_t.shape[1]

    tm = min(tm, B)
    tn = min(tn, Dout)
    tk = min(tk, Din)
    assert B % tm == 0 and Dout % tn == 0 and Din % tk == 0, "shapes must tile evenly"

    grid = (B // tm, Dout // tn, Din // tk)

    # VMEM budget: double-buffered inputs + double-buffered output + accumulator.
    vmem_bytes = 4 * (2 * (tm * tk + tk * tn + tn) + 3 * tm * tn) + (1 << 20)
    vmem_limit = min(max(vmem_bytes, 32 * 1024 * 1024), 48 * 1024 * 1024)

    cost = pl.CostEstimate(
        flops=2 * B * Din * Dout,
        transcendentals=0,
        bytes_accessed=4 * (B * Din + Din * Dout + Dout + B * Dout),
    )

    return pl.pallas_call(
        homomorphic_linear_kernel,
        out_shape=jax.ShapeDtypeStruct((B, Dout), jnp.float32),
        grid_spec=pltpu.PrefetchScalarGridSpec(
            num_scalar_prefetch=0,
            grid=grid,
            in_specs=[
                pl.BlockSpec((tm, tk), lambda i, j, k: (i, k)),   # x: batch x K tile
                pl.BlockSpec((tk, tn), lambda i, j, k: (k, j)),   # W_t: K x N tile
                pl.BlockSpec((1, tn), lambda i, j, k: (0, j)),    # bias: N tile
            ],
            out_specs=pl.BlockSpec((tm, tn), lambda i, j, k: (i, j)),
            scratch_shapes=[pltpu.VMEM((tm, tn), jnp.float32)],
        ),
        compiler_params=pltpu.CompilerParams(
            dimension_semantics=("parallel", "parallel", "arbitrary"),
            vmem_limit_bytes=vmem_limit,
        ),
        cost_estimate=cost,
    )(x, w_t, b)


if __name__ == "__main__":
    key = jax.random.PRNGKey(0)
    k_x, k_w, k_b = jax.random.split(key, 3)

    # Small but tiling-exercising shapes: 2x2x2 grid with TM=TN=128, TK=256,
    # so both v7x TensorCores get parallel work and the K-accumulator path runs.
    B, Din, Dout = 256, 512, 256

    # Input activations.
    x = jax.random.normal(k_x, (B, Din), dtype=jnp.float32)

    # Deterministic nn.Linear-style init: U(-1/sqrt(Din), 1/sqrt(Din)).
    bound = 1.0 / (Din ** 0.5)
    w = jax.random.uniform(k_w, (Dout, Din), dtype=jnp.float32,
                           minval=-bound, maxval=bound)        # torch layout [Dout, Din]
    b = jax.random.uniform(k_b, (Dout,), dtype=jnp.float32,
                           minval=-bound, maxval=bound)

    w_t = jnp.transpose(w)            # [Din, Dout] for the kernel
    b2 = b.reshape(1, Dout)

    out = jax.block_until_ready(homomorphic_linear(x, w_t, b2))

    # Plain-JAX reference of the same encode -> linear -> decode semantics.
    enc = jnp.trunc(x * SCALE)
    ref = (jnp.dot(enc, w_t, precision=jax.lax.Precision.HIGHEST) + b2) * INV_SCALE

    assert out.shape == (B, Dout) and out.dtype == jnp.float32
    assert jnp.allclose(out, ref, rtol=1e-4, atol=1e-4), "mismatch vs reference"

    print("KERNEL_OK")
</pallas_src>

<mosaic_0001>
module attributes {stable_mosaic.version = 11 : i64} {
  func.func @homomorphic_linear_kernel(%arg0: i32, %arg1: i32, %arg2: i32, %arg3: memref<128x256xf32, #tpu.memory_space<vmem>>, %arg4: memref<256x128xf32, #tpu.memory_space<vmem>>, %arg5: memref<1x128xf32, #tpu.memory_space<vmem>>, %arg6: memref<128x128xf32, #tpu.memory_space<vmem>>, %arg7: memref<128x128xf32, #tpu.memory_space<vmem>>) attributes {dimension_semantics = [#tpu.dimension_semantics<parallel>, #tpu.dimension_semantics<parallel>, #tpu.dimension_semantics<arbitrary>], iteration_bounds = array<i64: 2, 2, 2>, scalar_prefetch = 0 : i64, scratch_operands = 1 : i64, tpu.core_type = #tpu.core_type<tc>, window_params = [{transform_indices = @transform_0, window_bounds = array<i64: 128, 256>}, {transform_indices = @transform_1, window_bounds = array<i64: 256, 128>}, {transform_indices = @transform_2, window_bounds = array<i64: 1, 128>}, {transform_indices = @transform_3, window_bounds = array<i64: 128, 128>}]} {
    %c0_i32 = arith.constant 0 : i32
    %0 = arith.cmpi eq, %arg2, %c0_i32 : i32
    %1 = arith.extui %0 : i1 to i32
    %c0_i32_0 = arith.constant 0 : i32
    %2 = arith.cmpi ne, %1, %c0_i32_0 : i32
    scf.if %2 {
      %cst_11 = arith.constant 0.000000e+00 : f32
      %19 = vector.broadcast %cst_11 : f32 to vector<128x128xf32>
      %c0_12 = arith.constant 0 : index
      %c0_13 = arith.constant 0 : index
      %20 = vector.load %arg7[%c0_12, %c0_13] : memref<128x128xf32, #tpu.memory_space<vmem>>, vector<128x128xf32>
      tpu.vector_store %arg7[%c0_12, %c0_13], %19 {strides = array<i32>} : memref<128x128xf32, #tpu.memory_space<vmem>>, vector<128x128xf32>,
    } else {
    }
    %c0 = arith.constant 0 : index
    %c0_1 = arith.constant 0 : index
    %3 = vector.load %arg3[%c0, %c0_1] : memref<128x256xf32, #tpu.memory_space<vmem>>, vector<128x256xf32>
    %cst = arith.constant 0x4B000000 : f32
    %4 = vector.broadcast %cst : f32 to vector<128x256xf32>
    %5 = arith.mulf %3, %4 : vector<128x256xf32>
    %cst_2 = arith.constant 0.000000e+00 : f32
    %6 = vector.broadcast %cst_2 : f32 to vector<128x256xf32>
    %7 = arith.cmpf olt, %5, %6 : vector<128x256xf32>
    %8 = math.ceil %5 : vector<128x256xf32>
    %9 = math.floor %5 : vector<128x256xf32>
    %10 = arith.select %7, %8, %9 : vector<128x256xi1>, vector<128x256xf32>
    %c0_3 = arith.constant 0 : index
    %c0_4 = arith.constant 0 : index
    %11 = vector.load %arg7[%c0_3, %c0_4] : memref<128x128xf32, #tpu.memory_space<vmem>>, vector<128x128xf32>
    %c0_5 = arith.constant 0 : index
    %c0_6 = arith.constant 0 : index
    %12 = vector.load %arg4[%c0_5, %c0_6] : memref<256x128xf32, #tpu.memory_space<vmem>>, vector<256x128xf32>
    %cst_7 = arith.constant dense<0.000000e+00> : vector<128x128xf32>
    %13 = tpu.matmul %10, %12, %cst_7 {dimension_numbers = #tpu.dot_dimension_numbers<[1], [0], [0], [1], [0, 0, 1, 1], [], []>} : vector<128x256xf32>, vector<256x128xf32>, vector<128x128xf32> -> vector<128x128xf32>
    %14 = arith.addf %11, %13 : vector<128x128xf32>
    %c0_8 = arith.constant 0 : index
    %c0_9 = arith.constant 0 : index
    %15 = vector.load %arg7[%c0_8, %c0_9] : memref<128x128xf32, #tpu.memory_space<vmem>>, vector<128x128xf32>
    tpu.vector_store %arg7[%c0_8, %c0_9], %14 {strides = array<i32>} : memref<128x128xf32, #tpu.memory_space<vmem>>, vector<128x128xf32>,
    %c1_i32 = arith.constant 1 : i32
    %16 = arith.cmpi eq, %arg2, %c1_i32 : i32
    %17 = arith.extui %16 : i1 to i32
    %c0_i32_10 = arith.constant 0 : i32
    %18 = arith.cmpi ne, %17, %c0_i32_10 : i32
    scf.if %18 {
      %c0_11 = arith.constant 0 : index
      %c0_12 = arith.constant 0 : index
      %19 = vector.load %arg7[%c0_11, %c0_12] : memref<128x128xf32, #tpu.memory_space<vmem>>, vector<128x128xf32>
      %c0_13 = arith.constant 0 : index
      %c0_14 = arith.constant 0 : index
      %20 = vector.load %arg5[%c0_13, %c0_14] : memref<1x128xf32, #tpu.memory_space<vmem>>, vector<1x128xf32>
      %21 = vector.broadcast %20 : vector<1x128xf32> to vector<128x128xf32>
      %22 = arith.addf %19, %21 : vector<128x128xf32>
      %cst_15 = arith.constant 1.1920929E-7 : f32
      %23 = vector.broadcast %cst_15 : f32 to vector<128x128xf32>
      %24 = arith.mulf %22, %23 : vector<128x128xf32>
      %c0_16 = arith.constant 0 : index
      %c0_17 = arith.constant 0 : index
      %25 = vector.load %arg6[%c0_16, %c0_17] : memref<128x128xf32, #tpu.memory_space<vmem>>, vector<128x128xf32>
      tpu.vector_store %arg6[%c0_16, %c0_17], %24 {strides = array<i32>} : memref<128x128xf32, #tpu.memory_space<vmem>>, vector<128x128xf32>,
    } else {
    }
    return
  }
  func.func @transform_0(%arg0: i32, %arg1: i32, %arg2: i32) -> (i32, i32) {
    %c0_i32 = arith.constant 0 : i32
    return %arg0, %arg2 : i32, i32
  }
  func.func @transform_1(%arg0: i32, %arg1: i32, %arg2: i32) -> (i32, i32) {
    %c0_i32 = arith.constant 0 : i32
    return %arg2, %arg1 : i32, i32
  }
  func.func @transform_2(%arg0: i32, %arg1: i32, %arg2: i32) -> (i32, i32) {
    %c0_i32 = arith.constant 0 : i32
    %c0_i32_0 = arith.constant 0 : i32
    return %c0_i32, %arg1 : i32, i32
  }
  func.func @transform_3(%arg0: i32, %arg1: i32, %arg2: i32) -> (i32, i32) {
    %c0_i32 = arith.constant 0 : i32
    return %arg0, %arg1 : i32, i32
  }
}

</mosaic_0001>

<llo_original>
// kernel: tpu_custom_call.1
$region0: #{tpu_custom_call.1}
  #allocation0 [shape = 'u32[]', space=smem, size = 0x4, offset = 0x4, fixed_abs, tag = 'smem constant byte address 0x4 - core index']
  #allocation1 [shape = 'u32[144,128]{1,0:T(1,128)}', space=vmem, size = 0x12000, scoped, tag = 'internal scratch']
  #allocation2 [shape = 'f32[128,128]{1,0:T(8,128)}', space=vmem, size = 0x10000, scoped, tag = 'scratch operand']
  %s0 = inlined_call_operand.hbm [shape: f32[256,512], index: 0, kind: input, shape index: {}]
  %s1 = inlined_call_operand.hbm [shape: f32[512,256], index: 1, kind: input, shape index: {}]
  %s2 = inlined_call_operand.vmem [shape: f32[1,256], index: 2, kind: input, shape index: {}]
  %s3 = inlined_call_operand.hbm [shape: f32[256,256], index: 3, kind: output, shape index: {}]
  %s4 = sld [smem:[#allocation0]]
  $region61: #{tpu_custom_call.1} parent=0
    _
  %s6 = ssub.s32 1, %s4
  %s7 = scalar_select 0, %s6, %s4
  $region1: #{tpu_custom_call.1} parent=0
    #allocation3 [shape = 'u8[262144]{0}', space=vmem, size = 0x40000, scoped, tag = 'input window, operand 0']
    #allocation4 [shape = 's32[2]{0}', space=sflag, size = 0x8, scoped, tag = 'scoped memory for tpu_custom_call.1']
    #allocation5 [shape = 's32[2]{0}', space=sflag, size = 0x8, scoped, tag = 'scoped memory for tpu_custom_call.1']
    #allocation6 [shape = 'u8[262144]{0}', space=vmem, size = 0x40000, scoped, tag = 'input window, operand 1']
    #allocation7 [shape = 's32[2]{0}', space=sflag, size = 0x8, scoped, tag = 'scoped memory for tpu_custom_call.1']
    #allocation8 [shape = 'u8[131072]{0}', space=vmem, size = 0x20000, scoped, tag = 'output window, operand 0']
    %8 = vsyncpa [#allocation4], 0
    %s9 = scalar_lea.sflag [#allocation4], 1
    %10 = vsyncpa %s9, 0
    %11 = vsyncpa [#allocation7], 0
    %s12 = scalar_lea.sflag [#allocation7], 1
    %13 = vsyncpa %s12, 0
    %14 = vsyncpa [#allocation5], 0
    %s15 = scalar_lea.sflag [#allocation5], 1
    %16 = vsyncpa %s15, 0
    loop: start=0, step=1, limit=10
    $region2: #{tpu_custom_call.1} parent=1 // loop_pre_header
      _
    $region3: #{tpu_custom_call.1} parent=1 // loop_header
      %s18 = sphi 0, %s22
      %p19 = scmp.ge.s32.totalorder %s18, 10
      %s25 = sphi 0, %s44
      %s26 = sphi 0, %s40
      %s27 = sphi 0, %s36
      %s28 = sphi 0, %s25
      %s29 = sphi 0, %s26
      %s30 = sphi 0, %s27
      %s31 = sphi 0, %s28
      %s32 = sphi 0, %s29
      %s33 = sphi 0, %s30
      %s49 = sphi 0, %s51
      %s52 = sphi 0, %s49
      %s53 = sphi 0, %s52
      %s69 = sphi 0, %s53
      %s77 = sphi 0, %s79
      %s80 = sphi 0, %s77
      %s81 = sphi 0, %s80
      %s97 = sphi 0, %s81
      %s103 = sphi 0, %s105
      %s106 = sphi 0, %s103
      %s107 = sphi 0, %s106
      %s123 = sphi 0, %s107
      %s131 = sphi 0, %s133
      %s134 = sphi 0, %s131
      %s135 = sphi 0, %s134
      %s151 = sphi 0, %s135
    $region4: #{tpu_custom_call.1} parent=1 // loop_header_branch
      %21 = sbr.rel (%p19) target = $region8
    $region5: #{tpu_custom_call.1} parent=1 // loop_body
      %s23 = ssub.s32 %s18, 1
      %s24 = ssub.s32 %s18, 2
      %s34 = sadd.s32 1, %s27
      %p35 = scmp.ge.s32.totalorder %s34, 2
      %s36 = scalar_select %p35, 0, %s34
      %s37 = sadd.s32 1, %s26
      %s38 = scalar_select %p35, %s37, %s26
      %p39 = scmp.ge.s32.totalorder %s38, 2
      %s40 = scalar_select %p39, 0, %s38
      %s41 = sadd.s32 1, %s25
      %s42 = scalar_select %p39, %s41, %s25
      %p43 = scmp.ge.s32.totalorder %s42, 2
      %s44 = scalar_select %p43, 0, %s42
      %s45 = ssub.s32 %s25, %s44
      %s46 = ssub.s32 %s27, %s36
      %s47 = sor.u32 %s45, %s46
      %p48 = scmp.eq.s32.totalorder %s47, 0
      %s50 = sadd.s32 %s49, 1
      %s51 = scalar_select %p48, %s49, %s50
      %p54 = pneg %p48
      %p55 = scmp.eq.s32.totalorder %s18, 7
      %p56 = por %p54, %p55
      %p57 = scmp.ne.s32.totalorder %s49, %s52
      %p58 = scmp.eq.s32.totalorder %s18, 0
      %p59 = por %p57, %p58
      %p60 = scmp.ne.s32.totalorder %s49, %s52
      %p61 = scmp.eq.s32.totalorder %s23, 7
      %p62 = por %p60, %p61
      %p63 = scmp.ne.s32.totalorder %s52, %s53
      %p64 = scmp.eq.s32.totalorder %s23, 0
      %p65 = por %p63, %p64
      %p66 = scmp.ne.s32.totalorder %s52, %s53
      %p67 = scmp.eq.s32.totalorder %s24, 7
      %p68 = por %p66, %p67
      %p70 = scmp.ne.s32.totalorder %s53, %s69
      %p71 = scmp.eq.s32.totalorder %s24, 0
      %p72 = por %p70, %p71
      %s73 = ssub.s32 %s27, %s36
      %s74 = ssub.s32 %s26, %s40
      %s75 = sor.u32 %s73, %s74
      %p76 = scmp.eq.s32.totalorder %s75, 0
      %s78 = sadd.s32 %s77, 1
      %s79 = scalar_select %p76, %s77, %s78
      %p82 = pneg %p76
      %p83 = scmp.eq.s32.totalorder %s18, 7
      %p84 = por %p82, %p83
      %p85 = scmp.ne.s32.totalorder %s77, %s80
      %p86 = scmp.eq.s32.totalorder %s18, 0
      %p87 = por %p85, %p86
      %p88 = scmp.ne.s32.totalorder %s77, %s80
      %p89 = scmp.eq.s32.totalorder %s23, 7
      %p90 = por %p88, %p89
      %p91 = scmp.ne.s32.totalorder %s80, %s81
      %p92 = scmp.eq.s32.totalorder %s23, 0
      %p93 = por %p91, %p92
      %p94 = scmp.ne.s32.totalorder %s80, %s81
      %p95 = scmp.eq.s32.totalorder %s24, 7
      %p96 = por %p94, %p95
      %p98 = scmp.ne.s32.totalorder %s81, %s97
      %p99 = scmp.eq.s32.totalorder %s24, 0
      %p100 = por %p98, %p99
      %s101 = ssub.s32 %s26, %s40
      %p102 = scmp.eq.s32.totalorder %s101, 0
      %s104 = sadd.s32 %s103, 1
      %s105 = scalar_select %p102, %s103, %s104
      %p108 = pneg %p102
      %p109 = scmp.eq.s32.totalorder %s18, 7
      %p110 = por %p108, %p109
      %p111 = scmp.ne.s32.totalorder %s103, %s106
      %p112 = scmp.eq.s32.totalorder %s18, 0
      %p113 = por %p111, %p112
      %p114 = scmp.ne.s32.totalorder %s103, %s106
      %p115 = scmp.eq.s32.totalorder %s23, 7
      %p116 = por %p114, %p115
      %p117 = scmp.ne.s32.totalorder %s106, %s107
      %p118 = scmp.eq.s32.totalorder %s23, 0
      %p119 = por %p117, %p118
      %p120 = scmp.ne.s32.totalorder %s106, %s107
      %p121 = scmp.eq.s32.totalorder %s24, 7
      %p122 = por %p120, %p121
      %p124 = scmp.ne.s32.totalorder %s107, %s123
      %p125 = scmp.eq.s32.totalorder %s24, 0
      %p126 = por %p124, %p125
      %s127 = ssub.s32 %s25, %s44
      %s128 = ssub.s32 %s26, %s40
      %s129 = sor.u32 %s127, %s128
      %p130 = scmp.eq.s32.totalorder %s129, 0
      %s132 = sadd.s32 %s131, 1
      %s133 = scalar_select %p130, %s131, %s132
      %p136 = pneg %p130
      %p137 = scmp.eq.s32.totalorder %s18, 7
      %p138 = por %p136, %p137
      %p139 = scmp.ne.s32.totalorder %s131, %s134
      %p140 = scmp.eq.s32.totalorder %s18, 0
      %p141 = por %p139, %p140
      %p142 = scmp.ne.s32.totalorder %s131, %s134
      %p143 = scmp.eq.s32.totalorder %s23, 7
      %p144 = por %p142, %p143
      %p145 = scmp.ne.s32.totalorder %s134, %s135
      %p146 = scmp.eq.s32.totalorder %s23, 0
      %p147 = por %p145, %p146
      %p148 = scmp.ne.s32.totalorder %s134, %s135
      %p149 = scmp.eq.s32.totalorder %s24, 7
      %p150 = por %p148, %p149
      %p152 = scmp.ne.s32.totalorder %s135, %s151
      %p153 = scmp.eq.s32.totalorder %s24, 0
      %p154 = por %p152, %p153
      %p155 = scmp.le.s32.totalorder 1, %s18
      %p156 = scmp.lt.s32.totalorder %s18, 9
      %p157 = pnand %p155, %p156
      %p158 = pneg %p157
      // Predicated region
      $region9: #{tpu_custom_call.1} parent=5 // pred_check
        _
      $region10: #{tpu_custom_call.1} parent=5 // pred_check_branch
        %160 = sbr.rel (%p157) target = $region12
      $region11: #{tpu_custom_call.1} parent=5 // pred_region
        %s161 = ssub.s32 %s18, 1
      $region12: #{tpu_custom_call.1} parent=5 // pred_fallthru
        _
      %p162 = scmp.lt.s32.totalorder %s18, 8
      // Predicated region
      $region13: #{tpu_custom_call.1} parent=5 // pred_check
        %p163 = pneg %p162
      $region14: #{tpu_custom_call.1} parent=5 // pred_check_branch
        %165 = sbr.rel (%p163) target = $region16
      $region15: #{tpu_custom_call.1} parent=5 // pred_region
        // Predicated region
        $region17: #{tpu_custom_call.1} parent=15 // pred_check
          %p166 = pneg %p59
        $region18: #{tpu_custom_call.1} parent=15 // pred_check_branch
          %168 = sbr.rel (%p166) target = $region20
        $region19: #{tpu_custom_call.1} parent=15 // pred_region
          %s169 = sand.u32 %s49, 1
          %s170 = scalar_lea.sflag [#allocation4], %s169
          %s171 = sand.u32 %s49, 1
          %s172 = smul.addr %s171, 256
          %s173 = scalar_lea.vmem [#allocation3], %s172
          %s174 = smul.u32 16, %s25
          %s175 = smul.u32 2, %s27
          %s177 = ssub.s32 4096, 4096
          %178 = vsyncadd %s170, %s177
          %s179 = smul.addr %s174, 4
          %s180 = sadd.s32 %s175, %s179
          %s181 = smul.addr %s180, 128
          %s182 = scalar_lea.hbm %s0, %s181
          %s183 = sshll.u32 %s173, 4
          %s184 = int_to_ptr.vmem [resolvable:$true] %s183
          %189 = dma.hbm_to_vmem [thread:$0]  %s182, 4096, %s184, %s170, 512, 256, 16
        $region20: #{tpu_custom_call.1} parent=15 // pred_fallthru
          _
        // Predicated region
        $region21: #{tpu_custom_call.1} parent=15 // pred_check
          %p190 = pneg %p87
        $region22: #{tpu_custom_call.1} parent=15 // pred_check_branch
          %192 = sbr.rel (%p190) target = $region24
        $region23: #{tpu_custom_call.1} parent=15 // pred_region
          %s193 = sand.u32 %s77, 1
          %s194 = scalar_lea.sflag [#allocation7], %s193
          %s195 = sand.u32 %s77, 1
          %s196 = smul.addr %s195, 256
          %s197 = scalar_lea.vmem [#allocation6], %s196
          %s198 = smul.u32 32, %s27
          %s200 = ssub.s32 4096, 4096
          %201 = vsyncadd %s194, %s200
          %s202 = smul.addr %s198, 2
          %s203 = sadd.s32 %s26, %s202
          %s204 = smul.addr %s203, 128
          %s205 = scalar_lea.hbm %s1, %s204
          %s206 = sshll.u32 %s197, 4
          %s207 = int_to_ptr.vmem [resolvable:$true] %s206
          %212 = dma.hbm_to_vmem [thread:$0]  %s205, 4096, %s207, %s194, 256, 128, 8
        $region24: #{tpu_custom_call.1} parent=15 // pred_fallthru
          _
        // Predicated region
        $region25: #{tpu_custom_call.1} parent=15 // pred_check
          %p213 = pneg %p113
        $region26: #{tpu_custom_call.1} parent=15 // pred_check_branch
          %215 = sbr.rel (%p213) target = $region28
        $region27: #{tpu_custom_call.1} parent=15 // pred_region
          %p216 = scmp.lt.s32.totalorder %s26, 1
          %s217 = scalar_select %p216, %s26, 1
          %s218 = scalar_lea.vmem %s2, %s217
        $region28: #{tpu_custom_call.1} parent=15 // pred_fallthru
          _
      $region16: #{tpu_custom_call.1} parent=5 // pred_fallthru
        _
      %p219 = scmp.le.s32.totalorder 1, %s18
      %p220 = scmp.lt.s32.totalorder %s18, 9
      %p221 = pnand %p219, %p220
      %p222 = pneg %p221
      // Predicated region
      $region29: #{tpu_custom_call.1} parent=5 // pred_check
        _
      $region30: #{tpu_custom_call.1} parent=5 // pred_check_branch
        %224 = sbr.rel (%p221) target = $region32
      $region31: #{tpu_custom_call.1} parent=5 // pred_region
        %s225 = ssub.s32 %s18, 1
        %s226 = sand.u32 %s52, 1
        %s227 = scalar_lea.sflag [#allocation4], %s226
        %s228 = sand.u32 %s52, 1
        %s229 = smul.addr %s228, 256
        %s230 = scalar_lea.vmem [#allocation3], %s229
        // Predicated region
        $region33: #{tpu_custom_call.1} parent=31 // pred_check
          %p231 = pneg %p65
        $region34: #{tpu_custom_call.1} parent=31 // pred_check_branch
          %233 = sbr.rel (%p231) target = $region36
        $region35: #{tpu_custom_call.1} parent=31 // pred_region
          %234 = dma.done %s227, 4096
        $region36: #{tpu_custom_call.1} parent=31 // pred_fallthru
          _
        %s235 = sand.u32 %s80, 1
        %s236 = scalar_lea.sflag [#allocation7], %s235
        %s237 = sand.u32 %s80, 1
        %s238 = smul.addr %s237, 256
        %s239 = scalar_lea.vmem [#allocation6], %s238
        // Predicated region
        $region37: #{tpu_custom_call.1} parent=31 // pred_check
          %p240 = pneg %p93
        $region38: #{tpu_custom_call.1} parent=31 // pred_check_branch
          %242 = sbr.rel (%p240) target = $region40
        $region39: #{tpu_custom_call.1} parent=31 // pred_region
          %243 = dma.done %s236, 4096
        $region40: #{tpu_custom_call.1} parent=31 // pred_fallthru
          _
        %s244 = sand.u32 %s52, 1
        %s245 = scalar_lea.sflag [#allocation4], %s244
        %s246 = sand.u32 %s52, 1
        %s247 = smul.addr %s246, 256
        %s248 = scalar_lea.vmem [#allocation3], %s247
        %p249 = pneg %p65
        %p250 = pneg %p62
        %s251 = sand.u32 %s80, 1
        %s252 = scalar_lea.sflag [#allocation7], %s251
        %s253 = sand.u32 %s80, 1
        %s254 = smul.addr %s253, 256
        %s255 = scalar_lea.vmem [#allocation6], %s254
        %p256 = pneg %p93
        %p257 = pneg %p90
        %p258 = scmp.lt.s32.totalorder %s29, 1
        %s259 = scalar_select %p258, %s29, 1
        %s260 = scalar_lea.vmem %s2, %s259
        %p261 = pneg %p119
        %p262 = pneg %p116
        %p263 = pneg %p147
        %p264 = pneg %p144
        %s265 = sand.u32 %s134, 1
        %s266 = scalar_lea.sflag [#allocation5], %s265
        %s267 = sand.u32 %s134, 1
        %s268 = smul.addr %s267, 128
        %s269 = scalar_lea.vmem [#allocation8], %s268
        %s270 = smul.u32 16, %s28
        %s271 = smul.u32 2, %s30
        %s272 = smul.u32 32, %s30
        %p273 = scmp.lt.s32.totalorder %s29, 1
        %s274 = scalar_select %p273, %s29, 1
        %s275 = scalar_lea.vmem %s2, %s274
        %s276 = smul.u32 16, %s28
        %p277 = scmp.eq.s32.totalorder %s30, 0
        // Predicated region
        $region41: #{tpu_custom_call.1} parent=31 // pred_check
          %p278 = pneg %p277
        $region42: #{tpu_custom_call.1} parent=31 // pred_check_branch
          %280 = sbr.rel (%p278) target = $region44
        $region43: #{tpu_custom_call.1} parent=31 // pred_region
          %281 = vst [vmem:[#allocation2] sm:$0xff] 0.0
          %282 = vst [vmem:[#allocation2 + $0x8] sm:$0xff] 0.0
          %283 = vst [vmem:[#allocation2 + $0x10] sm:$0xff] 0.0
          %284 = vst [vmem:[#allocation2 + $0x18] sm:$0xff] 0.0
          %285 = vst [vmem:[#allocation2 + $0x20] sm:$0xff] 0.0
          %286 = vst [vmem:[#allocation2 + $0x28] sm:$0xff] 0.0
          %287 = vst [vmem:[#allocation2 + $0x30] sm:$0xff] 0.0
          %288 = vst [vmem:[#allocation2 + $0x38] sm:$0xff] 0.0
          %289 = vst [vmem:[#allocation2 + $0x40] sm:$0xff] 0.0
          %290 = vst [vmem:[#allocation2 + $0x48] sm:$0xff] 0.0
          %291 = vst [vmem:[#allocation2 + $0x50] sm:$0xff] 0.0
          %292 = vst [vmem:[#allocation2 + $0x58] sm:$0xff] 0.0
          %293 = vst [vmem:[#allocation2 + $0x60] sm:$0xff] 0.0
          %294 = vst [vmem:[#allocation2 + $0x68] sm:$0xff] 0.0
          %295 = vst [vmem:[#allocation2 + $0x70] sm:$0xff] 0.0
          %296 = vst [vmem:[#allocation2 + $0x78] sm:$0xff] 0.0
        $region44: #{tpu_custom_call.1} parent=31 // pred_fallthru
          _
        %v297 = vld [vmem:[%s230] sm:$0xff]
        %v298 = vld [vmem:[%s230 + $0x8] sm:$0xff]
        %v299 = vld [vmem:[%s230 + $0x10] sm:$0xff]
        %v300 = vld [vmem:[%s230 + $0x18] sm:$0xff]
        %v301 = vld [vmem:[%s230 + $0x20] sm:$0xff]
        %v302 = vld [vmem:[%s230 + $0x28] sm:$0xff]
        %v303 = vld [vmem:[%s230 + $0x30] sm:$0xff]
        %v304 = vld [vmem:[%s230 + $0x38] sm:$0xff]
        %v305 = vld [vmem:[%s230 + $0x40] sm:$0xff]
        %v306 = vld [vmem:[%s230 + $0x48] sm:$0xff]
        %v307 = vld [vmem:[%s230 + $0x50] sm:$0xff]
        %v308 = vld [vmem:[%s230 + $0x58] sm:$0xff]
        %v309 = vld [vmem:[%s230 + $0x60] sm:$0xff]
        %v310 = vld [vmem:[%s230 + $0x68] sm:$0xff]
        %v311 = vld [vmem:[%s230 + $0x70] sm:$0xff]
        %v312 = vld [vmem:[%s230 + $0x78] sm:$0xff]
        %v313 = vld [vmem:[%s230 + $0x80] sm:$0xff]
        %v314 = vld [vmem:[%s230 + $0x88] sm:$0xff]
        %v315 = vld [vmem:[%s230 + $0x90] sm:$0xff]
        %v316 = vld [vmem:[%s230 + $0x98] sm:$0xff]
        %v317 = vld [vmem:[%s230 + $0xa0] sm:$0xff]
        %v318 = vld [vmem:[%s230 + $0xa8] sm:$0xff]
        %v319 = vld [vmem:[%s230 + $0xb0] sm:$0xff]
        %v320 = vld [vmem:[%s230 + $0xb8] sm:$0xff]
        %v321 = vld [vmem:[%s230 + $0xc0] sm:$0xff]
        %v322 = vld [vmem:[%s230 + $0xc8] sm:$0xff]
        %v323 = vld [vmem:[%s230 + $0xd0] sm:$0xff]
        %v324 = vld [vmem:[%s230 + $0xd8] sm:$0xff]
        %v325 = vld [vmem:[%s230 + $0xe0] sm:$0xff]
        %v326 = vld [vmem:[%s230 + $0xe8] sm:$0xff]
        %v327 = vld [vmem:[%s230 + $0xf0] sm:$0xff]
        %v328 = vld [vmem:[%s230 + $0xf8] sm:$0xff]
        %v329 = vmul.f32 %v297, 8388608.0
        %v330 = vmul.f32 %v298, 8388608.0
        %v331 = vmul.f32 %v299, 8388608.0
        %v332 = vmul.f32 %v300, 8388608.0
        %v333 = vmul.f32 %v301, 8388608.0
        %v334 = vmul.f32 %v302, 8388608.0
        %v335 = vmul.f32 %v303, 8388608.0
        %v336 = vmul.f32 %v304, 8388608.0
        %v337 = vmul.f32 %v305, 8388608.0
        %v338 = vmul.f32 %v306, 8388608.0
        %v339 = vmul.f32 %v307, 8388608.0
        %v340 = vmul.f32 %v308, 8388608.0
        %v341 = vmul.f32 %v309, 8388608.0
        %v342 = vmul.f32 %v310, 8388608.0
        %v343 = vmul.f32 %v311, 8388608.0
        %v344 = vmul.f32 %v312, 8388608.0
        %v345 = vmul.f32 %v313, 8388608.0
        %v346 = vmul.f32 %v314, 8388608.0
        %v347 = vmul.f32 %v315, 8388608.0
        %v348 = vmul.f32 %v316, 8388608.0
        %v349 = vmul.f32 %v317, 8388608.0
        %v350 = vmul.f32 %v318, 8388608.0
        %v351 = vmul.f32 %v319, 8388608.0
        %v352 = vmul.f32 %v320, 8388608.0
        %v353 = vmul.f32 %v321, 8388608.0
        %v354 = vmul.f32 %v322, 8388608.0
        %v355 = vmul.f32 %v323, 8388608.0
        %v356 = vmul.f32 %v324, 8388608.0
        %v357 = vmul.f32 %v325, 8388608.0
        %v358 = vmul.f32 %v326, 8388608.0
        %v359 = vmul.f32 %v327, 8388608.0
        %v360 = vmul.f32 %v328, 8388608.0
        %vm361 = vcmp.lt.f32.partialorder %v329, 0.0
        %vm362 = vcmp.lt.f32.partialorder %v330, 0.0
        %vm363 = vcmp.lt.f32.partialorder %v331, 0.0
        %vm364 = vcmp.lt.f32.partialorder %v332, 0.0
        %vm365 = vcmp.lt.f32.partialorder %v333, 0.0
        %vm366 = vcmp.lt.f32.partialorder %v334, 0.0
        %vm367 = vcmp.lt.f32.partialorder %v335, 0.0
        %vm368 = vcmp.lt.f32.partialorder %v336, 0.0
        %vm369 = vcmp.lt.f32.partialorder %v337, 0.0
        %vm370 = vcmp.lt.f32.partialorder %v338, 0.0
        %vm371 = vcmp.lt.f32.partialorder %v339, 0.0
        %vm372 = vcmp.lt.f32.partialorder %v340, 0.0
        %vm373 = vcmp.lt.f32.partialorder %v341, 0.0
        %vm374 = vcmp.lt.f32.partialorder %v342, 0.0
        %vm375 = vcmp.lt.f32.partialorder %v343, 0.0
        %vm376 = vcmp.lt.f32.partialorder %v344, 0.0
        %vm377 = vcmp.lt.f32.partialorder %v345, 0.0
        %vm378 = vcmp.lt.f32.partialorder %v346, 0.0
        %vm379 = vcmp.lt.f32.partialorder %v347, 0.0
        %vm380 = vcmp.lt.f32.partialorder %v348, 0.0
        %vm381 = vcmp.lt.f32.partialorder %v349, 0.0
        %vm382 = vcmp.lt.f32.partialorder %v350, 0.0
        %vm383 = vcmp.lt.f32.partialorder %v351, 0.0
        %vm384 = vcmp.lt.f32.partialorder %v352, 0.0
        %vm385 = vcmp.lt.f32.partialorder %v353, 0.0
        %vm386 = vcmp.lt.f32.partialorder %v354, 0.0
        %vm387 = vcmp.lt.f32.partialorder %v355, 0.0
        %vm388 = vcmp.lt.f32.partialorder %v356, 0.0
        %vm389 = vcmp.lt.f32.partialorder %v357, 0.0
        %vm390 = vcmp.lt.f32.partialorder %v358, 0.0
        %vm391 = vcmp.lt.f32.partialorder %v359, 0.0
        %vm392 = vcmp.lt.f32.partialorder %v360, 0.0
        %v393 = vceil.f32 %v329
        %v394 = vceil.f32 %v330
        %v395 = vceil.f32 %v331
        %v396 = vceil.f32 %v332
        %v397 = vceil.f32 %v333
        %v398 = vceil.f32 %v334
        %v399 = vceil.f32 %v335
        %v400 = vceil.f32 %v336
        %v401 = vceil.f32 %v337
        %v402 = vceil.f32 %v338
        %v403 = vceil.f32 %v339
        %v404 = vceil.f32 %v340
        %v405 = vceil.f32 %v341
        %v406 = vceil.f32 %v342
        %v407 = vceil.f32 %v343
        %v408 = vceil.f32 %v344
        %v409 = vceil.f32 %v345
        %v410 = vceil.f32 %v346
        %v411 = vceil.f32 %v347
        %v412 = vceil.f32 %v348
        %v413 = vceil.f32 %v349
        %v414 = vceil.f32 %v350
        %v415 = vceil.f32 %v351
        %v416 = vceil.f32 %v352
        %v417 = vceil.f32 %v353
        %v418 = vceil.f32 %v354
        %v419 = vceil.f32 %v355
        %v420 = vceil.f32 %v356
        %v421 = vceil.f32 %v357
        %v422 = vceil.f32 %v358
        %v423 = vceil.f32 %v359
        %v424 = vceil.f32 %v360
        %v425 = vfloor.f32 %v329
        %v426 = vfloor.f32 %v330
        %v427 = vfloor.f32 %v331
        %v428 = vfloor.f32 %v332
        %v429 = vfloor.f32 %v333
        %v430 = vfloor.f32 %v334
        %v431 = vfloor.f32 %v335
        %v432 = vfloor.f32 %v336
        %v433 = vfloor.f32 %v337
        %v434 = vfloor.f32 %v338
        %v435 = vfloor.f32 %v339
        %v436 = vfloor.f32 %v340
        %v437 = vfloor.f32 %v341
        %v438 = vfloor.f32 %v342
        %v439 = vfloor.f32 %v343
        %v440 = vfloor.f32 %v344
        %v441 = vfloor.f32 %v345
        %v442 = vfloor.f32 %v346
        %v443 = vfloor.f32 %v347
        %v444 = vfloor.f32 %v348
        %v445 = vfloor.f32 %v349
        %v446 = vfloor.f32 %v350
        %v447 = vfloor.f32 %v351
        %v448 = vfloor.f32 %v352
        %v449 = vfloor.f32 %v353
        %v450 = vfloor.f32 %v354
        %v451 = vfloor.f32 %v355
        %v452 = vfloor.f32 %v356
        %v453 = vfloor.f32 %v357
        %v454 = vfloor.f32 %v358
        %v455 = vfloor.f32 %v359
        %v456 = vfloor.f32 %v360
        %v457 = vsel %vm361, %v393, %v425
        %v458 = vsel %vm362, %v394, %v426
        %v459 = vsel %vm363, %v395, %v427
        %v460 = vsel %vm364, %v396, %v428
        %v461 = vsel %vm365, %v397, %v429
        %v462 = vsel %vm366, %v398, %v430
        %v463 = vsel %vm367, %v399, %v431
        %v464 = vsel %vm368, %v400, %v432
        %v465 = vsel %vm369, %v401, %v433
        %v466 = vsel %vm370, %v402, %v434
        %v467 = vsel %vm371, %v403, %v435
        %v468 = vsel %vm372, %v404, %v436
        %v469 = vsel %vm373, %v405, %v437
        %v470 = vsel %vm374, %v406, %v438
        %v471 = vsel %vm375, %v407, %v439
        %v472 = vsel %vm376, %v408, %v440
        %v473 = vsel %vm377, %v409, %v441
        %v474 = vsel %vm378, %v410, %v442
        %v475 = vsel %vm379, %v411, %v443
        %v476 = vsel %vm380, %v412, %v444
        %v477 = vsel %vm381, %v413, %v445
        %v478 = vsel %vm382, %v414, %v446
        %v479 = vsel %vm383, %v415, %v447
        %v480 = vsel %vm384, %v416, %v448
        %v481 = vsel %vm385, %v417, %v449
        %v482 = vsel %vm386, %v418, %v450
        %v483 = vsel %vm387, %v419, %v451
        %v484 = vsel %vm388, %v420, %v452
        %v485 = vsel %vm389, %v421, %v453
        %v486 = vsel %vm390, %v422, %v454
        %v487 = vsel %vm391, %v423, %v455
        %v488 = vsel %vm392, %v424, %v456
        %v489 = vld [vmem:[#allocation2] sm:$0xff]
        %v490 = vld [vmem:[#allocation2 + $0x8] sm:$0xff]
        %v491 = vld [vmem:[#allocation2 + $0x10] sm:$0xff]
        %v492 = vld [vmem:[#allocation2 + $0x18] sm:$0xff]
        %v493 = vld [vmem:[#allocation2 + $0x20] sm:$0xff]
        %v494 = vld [vmem:[#allocation2 + $0x28] sm:$0xff]
        %v495 = vld [vmem:[#allocation2 + $0x30] sm:$0xff]
        %v496 = vld [vmem:[#allocation2 + $0x38] sm:$0xff]
        %v497 = vld [vmem:[#allocation2 + $0x40] sm:$0xff]
        %v498 = vld [vmem:[#allocation2 + $0x48] sm:$0xff]
        %v499 = vld [vmem:[#allocation2 + $0x50] sm:$0xff]
        %v500 = vld [vmem:[#allocation2 + $0x58] sm:$0xff]
        %v501 = vld [vmem:[#allocation2 + $0x60] sm:$0xff]
        %v502 = vld [vmem:[#allocation2 + $0x68] sm:$0xff]
        %v503 = vld [vmem:[#allocation2 + $0x70] sm:$0xff]
        %v504 = vld [vmem:[#allocation2 + $0x78] sm:$0xff]
        %v505 = vld [vmem:[%s239] sm:$0xff]
        %v506 = vld [vmem:[%s239 + $0x8] sm:$0xff]
        %v507 = vld [vmem:[%s239 + $0x10] sm:$0xff]
        %v508 = vld [vmem:[%s239 + $0x18] sm:$0xff]
        %v509 = vld [vmem:[%s239 + $0x20] sm:$0xff]
        %v510 = vld [vmem:[%s239 + $0x28] sm:$0xff]
        %v511 = vld [vmem:[%s239 + $0x30] sm:$0xff]
        %v512 = vld [vmem:[%s239 + $0x38] sm:$0xff]
        %v513 = vld [vmem:[%s239 + $0x40] sm:$0xff]
        %v514 = vld [vmem:[%s239 + $0x48] sm:$0xff]
        %v515 = vld [vmem:[%s239 + $0x50] sm:$0xff]
        %v516 = vld [vmem:[%s239 + $0x58] sm:$0xff]
        %v517 = vld [vmem:[%s239 + $0x60] sm:$0xff]
        %v518 = vld [vmem:[%s239 + $0x68] sm:$0xff]
        %v519 = vld [vmem:[%s239 + $0x70] sm:$0xff]
        %v520 = vld [vmem:[%s239 + $0x78] sm:$0xff]
        %v521 = vld [vmem:[%s239 + $0x80] sm:$0xff]
        %v522 = vld [vmem:[%s239 + $0x88] sm:$0xff]
        %v523 = vld [vmem:[%s239 + $0x90] sm:$0xff]
        %v524 = vld [vmem:[%s239 + $0x98] sm:$0xff]
        %v525 = vld [vmem:[%s239 + $0xa0] sm:$0xff]
        %v526 = vld [vmem:[%s239 + $0xa8] sm:$0xff]
        %v527 = vld [vmem:[%s239 + $0xb0] sm:$0xff]
        %v528 = vld [vmem:[%s239 + $0xb8] sm:$0xff]
        %v529 = vld [vmem:[%s239 + $0xc0] sm:$0xff]
        %v530 = vld [vmem:[%s239 + $0xc8] sm:$0xff]
        %v531 = vld [vmem:[%s239 + $0xd0] sm:$0xff]
        %v532 = vld [vmem:[%s239 + $0xd8] sm:$0xff]
        %v533 = vld [vmem:[%s239 + $0xe0] sm:$0xff]
        %v534 = vld [vmem:[%s239 + $0xe8] sm:$0xff]
        %v535 = vld [vmem:[%s239 + $0xf0] sm:$0xff]
        %v536 = vld [vmem:[%s239 + $0xf8] sm:$0xff]
        %537 = vmatprep.subr.mxu0 0.0
        %538 = vmatpush1.msra.mxu0 %v505
        %539 = vmatprep.subr.mxu0 0.0
        %540 = vmatpush1.msra.mxu0 %v506
        %541 = vmatprep.subr.mxu0 0.0
        %542 = vmatpush1.msra.mxu0 %v507
        %543 = vmatprep.subr.mxu0 0.0
        %544 = vmatpush1.msra.mxu0 %v508
        %545 = vmatprep.subr.mxu0 0.0
        %546 = vmatpush1.msra.mxu0 %v509
        %547 = vmatprep.subr.mxu0 0.0
        %548 = vmatpush1.msra.mxu0 %v510
        %549 = vmatprep.subr.mxu0 0.0
        %550 = vmatpush1.msra.mxu0 %v511
        %551 = vmatprep.subr.mxu0 0.0
        %552 = vmatpush1.msra.mxu0 %v512
        %553 = vmatprep.subr.mxu0 0.0
        %554 = vmatpush1.msra.mxu0 %v513
        %555 = vmatprep.subr.mxu0 0.0
        %556 = vmatpush1.msra.mxu0 %v514
        %557 = vmatprep.subr.mxu0 0.0
        %558 = vmatpush1.msra.mxu0 %v515
        %559 = vmatprep.subr.mxu0 0.0
        %560 = vmatpush1.msra.mxu0 %v516
        %561 = vmatprep.subr.mxu0 0.0
        %562 = vmatpush1.msra.mxu0 %v517
        %563 = vmatprep.subr.mxu0 0.0
        %564 = vmatpush1.msra.mxu0 %v518
        %565 = vmatprep.subr.mxu0 0.0
        %566 = vmatpush1.msra.mxu0 %v519
        %567 = vmatprep.subr.mxu0 0.0
        %568 = vmatpush1.msra.mxu0 %v520
        %569 = vmatprep.subr.mxu0 0.0
        %570 = vmatpush1.msra.mxu0 %v521
        %571 = vmatprep.subr.mxu0 0.0
        %572 = vmatpush1.msra.mxu0 %v522
        %573 = vmatprep.subr.mxu0 0.0
        %574 = vmatpush1.msra.mxu0 %v523
        %575 = vmatprep.subr.mxu0 0.0
        %576 = vmatpush1.msra.mxu0 %v524
        %577 = vmatprep.subr.mxu0 0.0
        %578 = vmatpush1.msra.mxu0 %v525
        %579 = vmatprep.subr.mxu0 0.0
        %580 = vmatpush1.msra.mxu0 %v526
        %581 = vmatprep.subr.mxu0 0.0
        %582 = vmatpush1.msra.mxu0 %v527
        %583 = vmatprep.subr.mxu0 0.0
        %584 = vmatpush1.msra.mxu0 %v528
        %585 = vmatprep.subr.mxu0 0.0
        %586 = vmatpush1.msra.mxu0 %v529
        %587 = vmatprep.subr.mxu0 0.0
        %588 = vmatpush1.msra.mxu0 %v530
        %589 = vmatprep.subr.mxu0 0.0
        %590 = vmatpush1.msra.mxu0 %v531
        %591 = vmatprep.subr.mxu0 0.0
        %592 = vmatpush1.msra.mxu0 %v532
        %593 = vmatprep.subr.mxu0 0.0
        %594 = vmatpush1.msra.mxu0 %v533
        %595 = vmatprep.subr.mxu0 0.0
        %596 = vmatpush1.msra.mxu0 %v534
        %597 = vmatprep.subr.mxu0 0.0
        %598 = vmatpush1.msra.mxu0 %v535
        %599 = vmatprep.subr.mxu0 0.0
        %600 = vmatpush1.msra.mxu0 %v536
        %601 = vmatprep.mubr.f32.mxu0 %v458
        %602 = vmatmul.mubr.f32.gmra.mrb[0].mxu0 %v457
        %v603 = vpop.f32.mrb[0].mxu0
        %v604 = vadd.f32 0.0, %v603
        %v605 = vpop.f32.mrb[0].mxu0
        %606 = vmatprep.mubr.f32.mxu0 %v460
        %607 = vmatmul.mubr.f32.gmra.mrb[0].mxu0 %v459
        %v608 = vpop.f32.mrb[0].mxu0
        %v609 = vadd.f32 0.0, %v608
        %v610 = vpop.f32.mrb[0].mxu0
        %611 = vmatprep.mubr.f32.mxu0 %v462
        %612 = vmatmul.mubr.f32.gmra.mrb[0].mxu0 %v461
        %v613 = vpop.f32.mrb[0].mxu0
        %v614 = vadd.f32 0.0, %v613
        %v615 = vpop.f32.mrb[0].mxu0
        %616 = vmatprep.mubr.f32.mxu0 %v464
        %617 = vmatmul.mubr.f32.gmra.mrb[0].mxu0 %v463
        %v618 = vpop.f32.mrb[0].mxu0
        %v619 = vadd.f32 0.0, %v618
        %v620 = vpop.f32.mrb[0].mxu0
        %621 = vmatprep.mubr.f32.mxu0 %v466
        %622 = vmatmul.mubr.f32.gmra.mrb[0].mxu0 %v465
        %v623 = vpop.f32.mrb[0].mxu0
        %v624 = vadd.f32 0.0, %v623
        %v625 = vpop.f32.mrb[0].mxu0
        %626 = vmatprep.mubr.f32.mxu0 %v468
        %627 = vmatmul.mubr.f32.gmra.mrb[0].mxu0 %v467
        %v628 = vpop.f32.mrb[0].mxu0
        %v629 = vadd.f32 0.0, %v628
        %v630 = vpop.f32.mrb[0].mxu0
        %631 = vmatprep.mubr.f32.mxu0 %v470
        %632 = vmatmul.mubr.f32.gmra.mrb[0].mxu0 %v469
        %v633 = vpop.f32.mrb[0].mxu0
        %v634 = vadd.f32 0.0, %v633
        %v635 = vpop.f32.mrb[0].mxu0
        %636 = vmatprep.mubr.f32.mxu0 %v472
        %637 = vmatmul.mubr.f32.gmra.mrb[0].mxu0 %v471
        %v638 = vpop.f32.mrb[0].mxu0
        %v639 = vadd.f32 0.0, %v638
        %v640 = vpop.f32.mrb[0].mxu0
        %641 = vmatprep.mubr.f32.mxu0 %v474
        %642 = vmatmul.mubr.f32.gmra.mrb[0].mxu0 %v473
        %v643 = vpop.f32.mrb[0].mxu0
        %v644 = vadd.f32 0.0, %v643
        %v645 = vpop.f32.mrb[0].mxu0
        %646 = vmatprep.mubr.f32.mxu0 %v476
        %647 = vmatmul.mubr.f32.gmra.mrb[0].mxu0 %v475
        %v648 = vpop.f32.mrb[0].mxu0
        %v649 = vadd.f32 0.0, %v648
        %v650 = vpop.f32.mrb[0].mxu0
        %651 = vmatprep.mubr.f32.mxu0 %v478
        %652 = vmatmul.mubr.f32.gmra.mrb[0].mxu0 %v477
        %v653 = vpop.f32.mrb[0].mxu0
        %v654 = vadd.f32 0.0, %v653
        %v655 = vpop.f32.mrb[0].mxu0
        %656 = vmatprep.mubr.f32.mxu0 %v480
        %657 = vmatmul.mubr.f32.gmra.mrb[0].mxu0 %v479
        %v658 = vpop.f32.mrb[0].mxu0
        %v659 = vadd.f32 0.0, %v658
        %v660 = vpop.f32.mrb[0].mxu0
        %661 = vmatprep.mubr.f32.mxu0 %v482
        %662 = vmatmul.mubr.f32.gmra.mrb[0].mxu0 %v481
        %v663 = vpop.f32.mrb[0].mxu0
        %v664 = vadd.f32 0.0, %v663
        %v665 = vpop.f32.mrb[0].mxu0
        %666 = vmatprep.mubr.f32.mxu0 %v484
        %667 = vmatmul.mubr.f32.gmra.mrb[0].mxu0 %v483
        %v668 = vpop.f32.mrb[0].mxu0
        %v669 = vadd.f32 0.0, %v668
        %v670 = vpop.f32.mrb[0].mxu0
        %671 = vmatprep.mubr.f32.mxu0 %v486
        %672 = vmatmul.mubr.f32.gmra.mrb[0].mxu0 %v485
        %v673 = vpop.f32.mrb[0].mxu0
        %v674 = vadd.f32 0.0, %v673
        %v675 = vpop.f32.mrb[0].mxu0
        %676 = vmatprep.mubr.f32.mxu0 %v488
        %677 = vmatmul.mubr.f32.gmra.mrb[0].mxu0 %v487
        %v678 = vpop.f32.mrb[0].mxu0
        %v679 = vadd.f32 0.0, %v678
        %v680 = vpop.f32.mrb[0].mxu0
        %681 = vdwg.mxu0
        %v682 = vadd.f32 %v489, %v604
        %v683 = vadd.f32 %v490, %v609
        %v684 = vadd.f32 %v491, %v614
        %v685 = vadd.f32 %v492, %v619
        %v686 = vadd.f32 %v493, %v624
        %v687 = vadd.f32 %v494, %v629
        %v688 = vadd.f32 %v495, %v634
        %v689 = vadd.f32 %v496, %v639
        %v690 = vadd.f32 %v497, %v644
        %v691 = vadd.f32 %v498, %v649
        %v692 = vadd.f32 %v499, %v654
        %v693 = vadd.f32 %v500, %v659
        %v694 = vadd.f32 %v501, %v664
        %v695 = vadd.f32 %v502, %v669
        %v696 = vadd.f32 %v503, %v674
        %v697 = vadd.f32 %v504, %v679
        %698 = vst [vmem:[#allocation2] sm:$0xff] %v682
        %699 = vst [vmem:[#allocation2 + $0x8] sm:$0xff] %v683
        %700 = vst [vmem:[#allocation2 + $0x10] sm:$0xff] %v684
        %701 = vst [vmem:[#allocation2 + $0x18] sm:$0xff] %v685
        %702 = vst [vmem:[#allocation2 + $0x20] sm:$0xff] %v686
        %703 = vst [vmem:[#allocation2 + $0x28] sm:$0xff] %v687
        %704 = vst [vmem:[#allocation2 + $0x30] sm:$0xff] %v688
        %705 = vst [vmem:[#allocation2 + $0x38] sm:$0xff] %v689
        %706 = vst [vmem:[#allocation2 + $0x40] sm:$0xff] %v690
        %707 = vst [vmem:[#allocation2 + $0x48] sm:$0xff] %v691
        %708 = vst [vmem:[#allocation2 + $0x50] sm:$0xff] %v692
        %709 = vst [vmem:[#allocation2 + $0x58] sm:$0xff] %v693
        %710 = vst [vmem:[#allocation2 + $0x60] sm:$0xff] %v694
        %711 = vst [vmem:[#allocation2 + $0x68] sm:$0xff] %v695
        %712 = vst [vmem:[#allocation2 + $0x70] sm:$0xff] %v696
        %713 = vst [vmem:[#allocation2 + $0x78] sm:$0xff] %v697
        %p714 = scmp.eq.s32.totalorder %s30, 1
        // Predicated region
        $region45: #{tpu_custom_call.1} parent=31 // pred_check
          %p715 = pneg %p714
        $region46: #{tpu_custom_call.1} parent=31 // pred_check_branch
          %717 = sbr.rel (%p715) target = $region48
        $region47: #{tpu_custom_call.1} parent=31 // pred_region
          %v718 = vld [vmem:[#allocation2] sm:$0xff]
          %v719 = vld [vmem:[#allocation2 + $0x8] sm:$0xff]
          %v720 = vld [vmem:[#allocation2 + $0x10] sm:$0xff]
          %v721 = vld [vmem:[#allocation2 + $0x18] sm:$0xff]
          %v722 = vld [vmem:[#allocation2 + $0x20] sm:$0xff]
          %v723 = vld [vmem:[#allocation2 + $0x28] sm:$0xff]
          %v724 = vld [vmem:[#allocation2 + $0x30] sm:$0xff]
          %v725 = vld [vmem:[#allocation2 + $0x38] sm:$0xff]
          %v726 = vld [vmem:[#allocation2 + $0x40] sm:$0xff]
          %v727 = vld [vmem:[#allocation2 + $0x48] sm:$0xff]
          %v728 = vld [vmem:[#allocation2 + $0x50] sm:$0xff]
          %v729 = vld [vmem:[#allocation2 + $0x58] sm:$0xff]
          %v730 = vld [vmem:[#allocation2 + $0x60] sm:$0xff]
          %v731 = vld [vmem:[#allocation2 + $0x68] sm:$0xff]
          %v732 = vld [vmem:[#allocation2 + $0x70] sm:$0xff]
          %v733 = vld [vmem:[#allocation2 + $0x78] sm:$0xff]
          %v734 = vld [vmem:[%s275] sm:$0x1]
          %v736 = vlaneseq
          %v737 = vshrl.u32 %v736, 7
          %v738 = vsub.s32 0, %v737
          %v739 = vrot.slane %v734, %v738
          %v741 = vadd.f32 %v718, %v739
          %v742 = vadd.f32 %v719, %v739
          %v743 = vadd.f32 %v720, %v739
          %v744 = vadd.f32 %v721, %v739
          %v745 = vadd.f32 %v722, %v739
          %v746 = vadd.f32 %v723, %v739
          %v747 = vadd.f32 %v724, %v739
          %v748 = vadd.f32 %v725, %v739
          %v749 = vadd.f32 %v726, %v739
          %v750 = vadd.f32 %v727, %v739
          %v751 = vadd.f32 %v728, %v739
          %v752 = vadd.f32 %v729, %v739
          %v753 = vadd.f32 %v730, %v739
          %v754 = vadd.f32 %v731, %v739
          %v755 = vadd.f32 %v732, %v739
          %v756 = vadd.f32 %v733, %v739
          %v757 = vmul.f32 %v741, 1.1920929e-07
          %v758 = vmul.f32 %v742, 1.1920929e-07
          %v759 = vmul.f32 %v743, 1.1920929e-07
          %v760 = vmul.f32 %v744, 1.1920929e-07
          %v761 = vmul.f32 %v745, 1.1920929e-07
          %v762 = vmul.f32 %v746, 1.1920929e-07
          %v763 = vmul.f32 %v747, 1.1920929e-07
          %v764 = vmul.f32 %v748, 1.1920929e-07
          %v765 = vmul.f32 %v749, 1.1920929e-07
          %v766 = vmul.f32 %v750, 1.1920929e-07
          %v767 = vmul.f32 %v751, 1.1920929e-07
          %v768 = vmul.f32 %v752, 1.1920929e-07
          %v769 = vmul.f32 %v753, 1.1920929e-07
          %v770 = vmul.f32 %v754, 1.1920929e-07
          %v771 = vmul.f32 %v755, 1.1920929e-07
          %v772 = vmul.f32 %v756, 1.1920929e-07
          %773 = vst [vmem:[%s269] sm:$0xff] %v757
          %774 = vst [vmem:[%s269 + $0x8] sm:$0xff] %v758
          %775 = vst [vmem:[%s269 + $0x10] sm:$0xff] %v759
          %776 = vst [vmem:[%s269 + $0x18] sm:$0xff] %v760
          %777 = vst [vmem:[%s269 + $0x20] sm:$0xff] %v761
          %778 = vst [vmem:[%s269 + $0x28] sm:$0xff] %v762
          %779 = vst [vmem:[%s269 + $0x30] sm:$0xff] %v763
          %780 = vst [vmem:[%s269 + $0x38] sm:$0xff] %v764
          %781 = vst [vmem:[%s269 + $0x40] sm:$0xff] %v765
          %782 = vst [vmem:[%s269 + $0x48] sm:$0xff] %v766
          %783 = vst [vmem:[%s269 + $0x50] sm:$0xff] %v767
          %784 = vst [vmem:[%s269 + $0x58] sm:$0xff] %v768
          %785 = vst [vmem:[%s269 + $0x60] sm:$0xff] %v769
          %786 = vst [vmem:[%s269 + $0x68] sm:$0xff] %v770
          %787 = vst [vmem:[%s269 + $0x70] sm:$0xff] %v771
          %788 = vst [vmem:[%s269 + $0x78] sm:$0xff] %v772
        $region48: #{tpu_custom_call.1} parent=31 // pred_fallthru
          _
        %s789 = sand.u32 %s134, 1
        %s790 = scalar_lea.sflag [#allocation5], %s789
        %s791 = sand.u32 %s134, 1
        %s792 = smul.addr %s791, 128
        %s793 = scalar_lea.vmem [#allocation8], %s792
        // Predicated region
        $region49: #{tpu_custom_call.1} parent=31 // pred_check
          %p794 = pneg %p144
        $region50: #{tpu_custom_call.1} parent=31 // pred_check_branch
          %796 = sbr.rel (%p794) target = $region52
        $region51: #{tpu_custom_call.1} parent=31 // pred_region
          %s797 = smul.u32 16, %s28
          %s799 = ssub.s32 2048, 2048
          %800 = vsyncadd %s790, %s799
          %s801 = smul.addr %s797, 2
          %s802 = sadd.s32 %s29, %s801
          %s803 = smul.addr %s802, 128
          %s804 = scalar_lea.hbm %s3, %s803
          %s805 = sshll.u32 %s793, 4
          %s806 = int_to_ptr.vmem [resolvable:$true] %s805
          %811 = dma.vmem_to_hbm [thread:$0]  %s806, 2048, %s804, %s790, 128, 256, 8
        $region52: #{tpu_custom_call.1} parent=31 // pred_fallthru
          _
      $region32: #{tpu_custom_call.1} parent=5 // pred_fallthru
        _
      %p812 = scmp.le.s32.totalorder 2, %s18
      // Predicated region
      $region53: #{tpu_custom_call.1} parent=5 // pred_check
        %p813 = pneg %p812
      $region54: #{tpu_custom_call.1} parent=5 // pred_check_branch
        %815 = sbr.rel (%p813) target = $region56
      $region55: #{tpu_custom_call.1} parent=5 // pred_region
        %s816 = ssub.s32 %s18, 2
        // Predicated region
        $region57: #{tpu_custom_call.1} parent=55 // pred_check
          %p817 = pneg %p150
        $region58: #{tpu_custom_call.1} parent=55 // pred_check_branch
          %819 = sbr.rel (%p817) target = $region60
        $region59: #{tpu_custom_call.1} parent=55 // pred_region
          %s820 = sand.u32 %s135, 1
          %s821 = scalar_lea.sflag [#allocation5], %s820
          %s822 = sand.u32 %s135, 1
          %s823 = smul.addr %s822, 128
          %s824 = scalar_lea.vmem [#allocation8], %s823
          %825 = dma.done %s821, 2048
        $region60: #{tpu_custom_call.1} parent=55 // pred_fallthru
          _
      $region56: #{tpu_custom_call.1} parent=5 // pred_fallthru
        _
    $region6: #{tpu_custom_call.1} parent=1 // loop_footer
      %s22 = sadd.s32 1, %s18
    $region7: #{tpu_custom_call.1} parent=1 // loop_footer_branch
      %17 = sbr.rel target = $region3
    $region8: #{tpu_custom_call.1} parent=1 // loop_exit
      _
    %826 = vsyncpa [#allocation4], 1
    %s827 = scalar_lea.sflag [#allocation4], 1
    %828 = vsyncpa %s827, 1
    %829 = vsyncpa [#allocation7], 1
    %s830 = scalar_lea.sflag [#allocation7], 1
    %831 = vsyncpa %s830, 1
    %832 = vsyncpa [#allocation5], 1
    %s833 = scalar_lea.sflag [#allocation5], 1
    %834 = vsyncpa %s833, 1

</llo_original>
